<compile_context>
chip_gen: v6e
topology: v6e:2x2x1
jax: 0.10.0
libtpu: 0.0.40
codegen_flags: <defaults>
</compile_context>

<pallas_src>
import numpy as np
import jax
import jax.numpy as jnp
from jax.experimental import pallas as pl
from jax.experimental.pallas import tpu as pltpu


# ----------------------------------------------------------------------------
# helpers
# ----------------------------------------------------------------------------
def _round_up(x: int, m: int) -> int:
    return ((x + m - 1) // m) * m


def _sublane_multiple(dtype) -> int:
    """Sublane packing granularity for the second-to-last dim."""
    itemsize = jnp.dtype(dtype).itemsize
    if itemsize >= 4:
        return 8
    if itemsize == 2:
        return 16
    return 32  # int8 / fp8


_LANE_TILE_CANDIDATES = (512, 256, 128)


def _pick_tile(min_extent: int, candidates) -> tuple[int, int]:
    """Pick a tile size minimizing the padded extent (tie-break: bigger tile).

    `min_extent` must already be aligned to the hardware granularity
    (sublane multiple or 128 lanes). Returns (tile, padded_extent).
    """
    if min_extent <= candidates[0]:
        # Single full-extent tile: zero pad waste, fewest grid steps.
        return min_extent, min_extent
    best_tile, best_pad = None, None
    for t in candidates:
        pad = _round_up(min_extent, t)
        if best_pad is None or pad < best_pad or (pad == best_pad and t > best_tile):
            best_tile, best_pad = t, pad
    return best_tile, best_pad


def _plan_m(M: int, compute_dtype) -> tuple[int, int]:
    sub = _sublane_multiple(compute_dtype)
    return _pick_tile(_round_up(M, sub), _LANE_TILE_CANDIDATES)


def _plan_n(N: int) -> tuple[int, int]:
    return _pick_tile(_round_up(N, 128), _LANE_TILE_CANDIDATES)


def _plan_k(K: int, compute_dtype) -> tuple[int, int]:
    itemsize = jnp.dtype(compute_dtype).itemsize
    cands = (2048, 1024, 512, 256, 128) if itemsize <= 2 else (1024, 512, 256, 128)
    return _pick_tile(_round_up(K, 128), cands)


def _resolve_compute_dtype(x_dtype, w_dtype, compute_dtype):
    """Default to bf16 MXU inputs when both operands are f32."""
    if compute_dtype == "auto":
        if jnp.dtype(x_dtype) == jnp.float32 and jnp.dtype(w_dtype) == jnp.float32:
            return jnp.bfloat16
        return None
    return compute_dtype


def _vmem_limit_bytes(needed: int) -> int:
    """Scoped-VMEM request: tiling-derived, with headroom below physical VMEM."""
    try:
        cap = int(pltpu.get_tpu_info().vmem_capacity_bytes)
    except Exception:  # pragma: no cover - CPU / interpret fallback
        cap = 64 * 1024 * 1024  # conservative: v7x per-TensorCore
    # Leave ~25% headroom for Mosaic internal scratch / semaphores / pipeline
    # buffers. On 128-MiB parts (v5e/v6e) allow up to ~96 MiB scoped.
    ceiling = min(int(cap * 0.75), 100 * 1024 * 1024)
    floor = 32 * 1024 * 1024
    return int(max(min(max(2 * needed, floor), ceiling), needed))


# ----------------------------------------------------------------------------
# kernel
# ----------------------------------------------------------------------------
def _dense_general_kernel(x_ref, w_ref, o_ref, acc_ref):
    """One (tm, tn) output tile, accumulated over the K grid axis (axis 2)."""
    k = pl.program_id(2)

    prod = jnp.dot(x_ref[...], w_ref[...], preferred_element_type=jnp.float32)

    # Write on the first k step (skips zero-fill + add), accumulate afterwards.
    @pl.when(k == 0)
    def _():
        acc_ref[...] = prod

    @pl.when(k != 0)
    def _():
        acc_ref[...] += prod

    @pl.when(k == pl.num_programs(2) - 1)
    def _():
        o_ref[...] = acc_ref[...].astype(o_ref.dtype)


def _pallas_matmul_padded(xp, wp, *, tm, tn, tk, out_dtype):
    """xp: (M_pad, K_pad), wp: (K_pad, N_pad); already tile-aligned."""
    M_pad, K_pad = xp.shape
    K_pad2, N_pad = wp.shape
    assert K_pad == K_pad2, (K_pad, K_pad2)
    assert M_pad % tm == 0 and N_pad % tn == 0 and K_pad % tk == 0

    grid = (M_pad // tm, N_pad // tn, K_pad // tk)

    xb = jnp.dtype(xp.dtype).itemsize
    wb = jnp.dtype(wp.dtype).itemsize
    ob = jnp.dtype(out_dtype).itemsize

    # Double-buffered inputs + double-buffered output + f32 accumulator.
    needed = 2 * (tm * tk * xb + tk * tn * wb) + 2 * tm * tn * ob + tm * tn * 4
    vmem_limit = _vmem_limit_bytes(needed)

    cost = pl.CostEstimate(
        flops=2 * M_pad * N_pad * K_pad,
        # Real HBM traffic including tile re-fetch factors.
        bytes_accessed=(
            M_pad * K_pad * xb * (N_pad // tn)
            + K_pad * N_pad * wb * (M_pad // tm)
            + M_pad * N_pad * ob
        ),
        transcendentals=0,
    )

    return pl.pallas_call(
        _dense_general_kernel,
        out_shape=jax.ShapeDtypeStruct((M_pad, N_pad), out_dtype),
        grid_spec=pltpu.PrefetchScalarGridSpec(
            num_scalar_prefetch=0,
            grid=grid,
            in_specs=[
                pl.BlockSpec((tm, tk), lambda i, j, k: (i, k)),
                pl.BlockSpec((tk, tn), lambda i, j, k: (k, j)),
            ],
            out_specs=pl.BlockSpec((tm, tn), lambda i, j, k: (i, j)),
            scratch_shapes=[pltpu.VMEM((tm, tn), jnp.float32)],
        ),
        compiler_params=pltpu.CompilerParams(
            dimension_semantics=("parallel", "parallel", "arbitrary"),
            vmem_limit_bytes=vmem_limit,
        ),
        cost_estimate=cost,
    )(xp, wp)


def dense_general_matmul(x2d, w2d, *, out_dtype=None, compute_dtype="auto"):
    """x2d: (M, K), w2d: (K, N) -> (M, N) via the tiled Pallas TPU kernel."""
    M, K = x2d.shape
    K2, N = w2d.shape
    assert K == K2, (K, K2)
    if out_dtype is None:
        out_dtype = jnp.promote_types(x2d.dtype, w2d.dtype)

    cdt = _resolve_compute_dtype(x2d.dtype, w2d.dtype, compute_dtype)
    if cdt is not None:
        x2d = x2d.astype(cdt)
        w2d = w2d.astype(cdt)

    tm, M_pad = _plan_m(M, x2d.dtype)
    tn, N_pad = _plan_n(N)
    tk, K_pad = _plan_k(K, x2d.dtype)

    xp = x2d
    if (M_pad, K_pad) != (M, K):
        xp = jnp.pad(x2d, ((0, M_pad - M), (0, K_pad - K)))
    wp = w2d
    if (K_pad, N_pad) != (K, N):
        wp = jnp.pad(w2d, ((0, K_pad - K), (0, N_pad - N)))

    out = _pallas_matmul_padded(xp, wp, tm=tm, tn=tn, tk=tk, out_dtype=out_dtype)
    if (M_pad, N_pad) != (M, N):
        out = out[:M, :N]
    return out


# ----------------------------------------------------------------------------
# module wrapper
# ----------------------------------------------------------------------------
class DenseGeneral:
    """JAX/Pallas equivalent of the PyTorch DenseGeneral module (no bias)."""

    def __init__(
        self,
        in_shapes,
        out_features,
        axis=(-1,),
        key=None,
        dtype=jnp.float32,
        compute_dtype="auto",
    ):
        self.in_shapes = tuple(in_shapes)
        self.out_features = tuple(out_features)
        self.axis = tuple(axis)
        self.kernel_shape = self.in_shapes + self.out_features
        if key is None:
            key = jax.random.PRNGKey(0)
        # Deterministic synthetic weights in flax layout (in_shapes + out_features).
        self.kernel = (
            0.02 * jax.random.normal(key, self.kernel_shape, dtype=jnp.float32)
        ).astype(dtype)

        # MXU compute dtype: bf16 by default for f32 params (f32 accumulation
        # stays inside the kernel). Pass an fp8 dtype here on v7x for an
        # fp8 weight/activation path, or None for pure f32.
        if compute_dtype == "auto":
            self.compute_dtype = (
                jnp.bfloat16 if jnp.dtype(dtype) == jnp.float32 else jnp.dtype(dtype)
            )
        elif compute_dtype is None:
            self.compute_dtype = jnp.dtype(dtype)
        else:
            self.compute_dtype = jnp.dtype(compute_dtype)

        self._K = int(np.prod(self.in_shapes))
        self._N = int(np.prod(self.out_features))

        # N/K tiling depends only on (N, K, compute_dtype) -> plan and cache
        # the reshaped + cast + padded weight ONCE instead of per forward.
        self._tn, self._N_pad = _plan_n(self._N)
        self._tk, self._K_pad = _plan_k(self._K, self.compute_dtype)
        w2d = self.kernel.reshape(self._K, self._N).astype(self.compute_dtype)
        if (self._K_pad, self._N_pad) != (self._K, self._N):
            w2d = jnp.pad(
                w2d,
                ((0, self._K_pad - self._K), (0, self._N_pad - self._N)),
            )
        self._w2d_padded = w2d

    def __call__(self, inputs: jax.Array) -> jax.Array:
        n_in = len(self.in_shapes)
        assert inputs.shape[-n_in:] == self.in_shapes, (inputs.shape, self.in_shapes)

        # The torch module always contracts the trailing len(in_shapes) axes;
        # validate `axis` is consistent so a bad spec fails loudly.
        norm_axis = tuple(sorted(a % inputs.ndim for a in self.axis))
        expected = tuple(range(inputs.ndim - n_in, inputs.ndim))
        assert norm_axis == expected, (
            f"axis {self.axis} must be the trailing {n_in} axes "
            f"(got {norm_axis}, expected {expected})"
        )

        batch_shape = inputs.shape[:-n_in]
        M = int(np.prod(batch_shape)) if batch_shape else 1

        # Output dtype pinned from the *original* operand dtypes.
        out_dtype = jnp.promote_types(inputs.dtype, self.kernel.dtype)

        x2d = inputs.reshape((M, self._K)).astype(self.compute_dtype)
        tm, M_pad = _plan_m(M, self.compute_dtype)
        if (M_pad, self._K_pad) != (M, self._K):
            x2d = jnp.pad(x2d, ((0, M_pad - M), (0, self._K_pad - self._K)))

        y2d = _pallas_matmul_padded(
            x2d, self._w2d_padded,
            tm=tm, tn=self._tn, tk=self._tk, out_dtype=out_dtype,
        )
        if (M_pad, self._N_pad) != (M, self._N):
            y2d = y2d[:M, :self._N]
        return y2d.reshape(batch_shape + self.out_features)


# ----------------------------------------------------------------------------
# self-test
# ----------------------------------------------------------------------------
if __name__ == "__main__":
    key = jax.random.PRNGKey(0)
    k_in, k_w = jax.random.split(key)

    # Small shapes consistent with the module:
    #   in_shapes=(4, 8)     -> contracted size K = 32
    #   out_features=(2, 16) -> output size N = 32
    #   input: (batch=2, seq=6, 4, 8) -> M = 12
    in_shapes = (4, 8)
    out_features = (2, 16)
    x = jax.random.normal(k_in, (2, 6) + in_shapes, dtype=jnp.float32)

    # Default path: bf16 MXU inputs, f32 accumulation, f32 output.
    layer = DenseGeneral(in_shapes, out_features, axis=(-2, -1), key=k_w)
    y = jax.block_until_ready(layer(x))

    # Reference: plain-JAX tensordot over the trailing axes (same semantics as
    # the torch module's flatten + bias-free Linear).
    y_ref = jnp.tensordot(x, layer.kernel, axes=len(in_shapes))
    assert y.shape == (2, 6) + out_features, y.shape
    # bf16 operands (f32 accumulation) vs f32 reference -> loosened tolerance.
    np.testing.assert_allclose(np.asarray(y), np.asarray(y_ref),
                               rtol=2e-2, atol=2e-2)

    # Pure-f32 path: should match the f32 reference tightly.
    layer_f32 = DenseGeneral(in_shapes, out_features, axis=(-2, -1), key=k_w,
                             compute_dtype=None)
    y32 = jax.block_until_ready(layer_f32(x))
    np.testing.assert_allclose(np.asarray(y32), np.asarray(y_ref),
                               rtol=1e-5, atol=1e-5)

    print("KERNEL_OK")
</pallas_src>

<mosaic_0001>
module attributes {stable_mosaic.version = 11 : i64} {
  func.func @_dense_general_kernel(%arg0: i32, %arg1: i32, %arg2: i32, %arg3: memref<16x128xbf16, #tpu.memory_space<vmem>>, %arg4: memref<128x128xbf16, #tpu.memory_space<vmem>>, %arg5: memref<16x128xf32, #tpu.memory_space<vmem>>, %arg6: memref<16x128xf32, #tpu.memory_space<vmem>>) attributes {dimension_semantics = [#tpu.dimension_semantics<parallel>, #tpu.dimension_semantics<parallel>, #tpu.dimension_semantics<arbitrary>], iteration_bounds = array<i64: 1, 1, 1>, scalar_prefetch = 0 : i64, scratch_operands = 1 : i64, tpu.core_type = #tpu.core_type<tc>, window_params = [{transform_indices = @transform_0, window_bounds = array<i64: 16, 128>}, {transform_indices = @transform_1, window_bounds = array<i64: 128, 128>}, {transform_indices = @transform_2, window_bounds = array<i64: 16, 128>}]} {
    %c0 = arith.constant 0 : index
    %c0_0 = arith.constant 0 : index
    %0 = vector.load %arg3[%c0, %c0_0] : memref<16x128xbf16, #tpu.memory_space<vmem>>, vector<16x128xbf16>
    %c0_1 = arith.constant 0 : index
    %c0_2 = arith.constant 0 : index
    %1 = vector.load %arg4[%c0_1, %c0_2] : memref<128x128xbf16, #tpu.memory_space<vmem>>, vector<128x128xbf16>
    %cst = arith.constant dense<0.000000e+00> : vector<16x128xf32>
    %2 = tpu.matmul %0, %1, %cst {dimension_numbers = #tpu.dot_dimension_numbers<[1], [0], [0], [1], [0, 0, 1, 1], [], []>} : vector<16x128xbf16>, vector<128x128xbf16>, vector<16x128xf32> -> vector<16x128xf32>
    %c0_i32 = arith.constant 0 : i32
    %3 = arith.cmpi eq, %arg2, %c0_i32 : i32
    %4 = arith.extui %3 : i1 to i32
    %c0_i32_3 = arith.constant 0 : i32
    %5 = arith.cmpi ne, %4, %c0_i32_3 : i32
    scf.if %5 {
      %c0_8 = arith.constant 0 : index
      %c0_9 = arith.constant 0 : index
      %12 = vector.load %arg6[%c0_8, %c0_9] : memref<16x128xf32, #tpu.memory_space<vmem>>, vector<16x128xf32>
      tpu.vector_store %arg6[%c0_8, %c0_9], %2 {strides = array<i32>} : memref<16x128xf32, #tpu.memory_space<vmem>>, vector<16x128xf32>,
    } else {
    }
    %c0_i32_4 = arith.constant 0 : i32
    %6 = arith.cmpi ne, %arg2, %c0_i32_4 : i32
    %7 = arith.extui %6 : i1 to i32
    %c0_i32_5 = arith.constant 0 : i32
    %8 = arith.cmpi ne, %7, %c0_i32_5 : i32
    scf.if %8 {
      %c0_8 = arith.constant 0 : index
      %c0_9 = arith.constant 0 : index
      %12 = vector.load %arg6[%c0_8, %c0_9] : memref<16x128xf32, #tpu.memory_space<vmem>>, vector<16x128xf32>
      %13 = arith.addf %12, %2 : vector<16x128xf32>
      %c0_10 = arith.constant 0 : index
      %c0_11 = arith.constant 0 : index
      %14 = vector.load %arg6[%c0_10, %c0_11] : memref<16x128xf32, #tpu.memory_space<vmem>>, vector<16x128xf32>
      tpu.vector_store %arg6[%c0_10, %c0_11], %13 {strides = array<i32>} : memref<16x128xf32, #tpu.memory_space<vmem>>, vector<16x128xf32>,
    } else {
    }
    %c0_i32_6 = arith.constant 0 : i32
    %9 = arith.cmpi eq, %arg2, %c0_i32_6 : i32
    %10 = arith.extui %9 : i1 to i32
    %c0_i32_7 = arith.constant 0 : i32
    %11 = arith.cmpi ne, %10, %c0_i32_7 : i32
    scf.if %11 {
      %c0_8 = arith.constant 0 : index
      %c0_9 = arith.constant 0 : index
      %12 = vector.load %arg6[%c0_8, %c0_9] : memref<16x128xf32, #tpu.memory_space<vmem>>, vector<16x128xf32>
      %c0_10 = arith.constant 0 : index
      %c0_11 = arith.constant 0 : index
      %13 = vector.load %arg5[%c0_10, %c0_11] : memref<16x128xf32, #tpu.memory_space<vmem>>, vector<16x128xf32>
      tpu.vector_store %arg5[%c0_10, %c0_11], %12 {strides = array<i32>} : memref<16x128xf32, #tpu.memory_space<vmem>>, vector<16x128xf32>,
    } else {
    }
    return
  }
  func.func @transform_0(%arg0: i32, %arg1: i32, %arg2: i32) -> (i32, i32) {
    %c0_i32 = arith.constant 0 : i32
    return %arg0, %arg2 : i32, i32
  }
  func.func @transform_1(%arg0: i32, %arg1: i32, %arg2: i32) -> (i32, i32) {
    %c0_i32 = arith.constant 0 : i32
    return %arg2, %arg1 : i32, i32
  }
  func.func @transform_2(%arg0: i32, %arg1: i32, %arg2: i32) -> (i32, i32) {
    %c0_i32 = arith.constant 0 : i32
    return %arg0, %arg1 : i32, i32
  }
}

</mosaic_0001>

<llo_original>
// kernel: tpu_custom_call.1
$region0: #{tpu_custom_call.1}
  #allocation0 [shape = 'u32[]', space=smem, size = 0x4, offset = 0x4, fixed_abs, tag = 'smem constant byte address 0x4 - core index']
  #allocation1 [shape = 'u32[144,128]{1,0:T(1,128)}', space=vmem, size = 0x12000, scoped, tag = 'internal scratch']
  #allocation2 [shape = 'f32[16,128]{1,0:T(8,128)}', space=vmem, size = 0x2000, scoped, tag = 'scratch operand']
  %s0 = inlined_call_operand.hbm [shape: bf16[16,128], index: 0, kind: input, shape index: {}]
  %s1 = inlined_call_operand.hbm [shape: bf16[128,128], index: 1, kind: input, shape index: {}]
  %s2 = inlined_call_operand.hbm [shape: f32[16,128], index: 2, kind: output, shape index: {}]
  %s3 = sld [smem:[#allocation0]]
  $region38: #{tpu_custom_call.1} parent=0
    _
  %s5 = ssub.s32 1, %s3
  %s6 = scalar_select 0, %s5, %s3
  $region1: #{tpu_custom_call.1} parent=0
    #allocation3 [shape = 'u8[4096]{0}', space=vmem, size = 0x1000, scoped, tag = 'input window, operand 0, single buffered']
    #allocation4 [shape = 's32[1]{0}', space=sflag, size = 0x4, scoped, tag = 'scoped memory for tpu_custom_call.1']
    #allocation5 [shape = 's32[1]{0}', space=sflag, size = 0x4, scoped, tag = 'scoped memory for tpu_custom_call.1']
    #allocation6 [shape = 'u8[32768]{0}', space=vmem, size = 0x8000, scoped, tag = 'input window, operand 1, single buffered']
    #allocation7 [shape = 's32[1]{0}', space=sflag, size = 0x4, scoped, tag = 'scoped memory for tpu_custom_call.1']
    #allocation8 [shape = 'u8[8192]{0}', space=vmem, size = 0x2000, scoped, tag = 'output window, operand 0, single buffered']
    %7 = vsyncpa [#allocation4], 0
    %8 = vsyncpa [#allocation7], 0
    %9 = vsyncpa [#allocation5], 0
    // Predicated region
    $region2: #{tpu_custom_call.1} parent=1 // pred_check
      _
    $region3: #{tpu_custom_call.1} parent=1 // pred_check_branch
      %11 = sbr.rel (0) target = $region5
    $region4: #{tpu_custom_call.1} parent=1 // pred_region
      %s13 = ssub.s32 128, 128
      %14 = vsyncadd [#allocation4], %s13
      %s15 = sshll.u32 [#allocation3], 4
      %s16 = int_to_ptr.vmem [resolvable:$true] %s15
      %21 = dma.hbm_to_vmem [thread:$0]  %s0, 128, %s16, [#allocation4], 64, 64, 4
    $region5: #{tpu_custom_call.1} parent=1 // pred_fallthru
      _
    // Predicated region
    $region6: #{tpu_custom_call.1} parent=1 // pred_check
      _
    $region7: #{tpu_custom_call.1} parent=1 // pred_check_branch
      %23 = sbr.rel (0) target = $region9
    $region8: #{tpu_custom_call.1} parent=1 // pred_region
      %s25 = ssub.s32 1024, 1024
      %26 = vsyncadd [#allocation7], %s25
      %s27 = sshll.u32 [#allocation6], 4
      %s28 = int_to_ptr.vmem [resolvable:$true] %s27
      %33 = dma.hbm_to_vmem [thread:$0]  %s1, 1024, %s28, [#allocation7], 64, 64, 4
    $region9: #{tpu_custom_call.1} parent=1 // pred_fallthru
      _
    // Predicated region
    $region10: #{tpu_custom_call.1} parent=1 // pred_check
      _
    $region11: #{tpu_custom_call.1} parent=1 // pred_check_branch
      %35 = sbr.rel (0) target = $region13
    $region12: #{tpu_custom_call.1} parent=1 // pred_region
      %36 = dma.done [#allocation4], 128
    $region13: #{tpu_custom_call.1} parent=1 // pred_fallthru
      _
    // Predicated region
    $region14: #{tpu_custom_call.1} parent=1 // pred_check
      _
    $region15: #{tpu_custom_call.1} parent=1 // pred_check_branch
      %38 = sbr.rel (0) target = $region17
    $region16: #{tpu_custom_call.1} parent=1 // pred_region
      %39 = dma.done [#allocation7], 1024
    $region17: #{tpu_custom_call.1} parent=1 // pred_fallthru
      _
    %v41 = vld [vmem:[#allocation3] sm:$0xf]
    %v42 = vld [vmem:[#allocation3 + $0x4] sm:$0xf]
    %v43 = vld [vmem:[#allocation6] sm:$0xf]
    %v44 = vld [vmem:[#allocation6 + $0x4] sm:$0xf]
    %v45 = vld [vmem:[#allocation6 + $0x8] sm:$0xf]
    %v46 = vld [vmem:[#allocation6 + $0xc] sm:$0xf]
    %v47 = vld [vmem:[#allocation6 + $0x10] sm:$0xf]
    %v48 = vld [vmem:[#allocation6 + $0x14] sm:$0xf]
    %v49 = vld [vmem:[#allocation6 + $0x18] sm:$0xf]
    %v50 = vld [vmem:[#allocation6 + $0x1c] sm:$0xf]
    %v51 = vld [vmem:[#allocation6 + $0x20] sm:$0xf]
    %v52 = vld [vmem:[#allocation6 + $0x24] sm:$0xf]
    %v53 = vld [vmem:[#allocation6 + $0x28] sm:$0xf]
    %v54 = vld [vmem:[#allocation6 + $0x2c] sm:$0xf]
    %v55 = vld [vmem:[#allocation6 + $0x30] sm:$0xf]
    %v56 = vld [vmem:[#allocation6 + $0x34] sm:$0xf]
    %v57 = vld [vmem:[#allocation6 + $0x38] sm:$0xf]
    %v58 = vld [vmem:[#allocation6 + $0x3c] sm:$0xf]
    %v61 = vunpack.c.l.b16 %v41
    %v62 = vunpack.c.l.b16 %v42
    %v63 = vpack.c.b16 %v62, %v61
    %v81 = vunpack.c.l.b16 %v43
    %v82 = vunpack.c.l.b16 %v44
    %v83 = vunpack.c.l.b16 %v45
    %v84 = vunpack.c.l.b16 %v46
    %v85 = vunpack.c.l.b16 %v47
    %v86 = vunpack.c.l.b16 %v48
    %v87 = vunpack.c.l.b16 %v49
    %v88 = vunpack.c.l.b16 %v50
    %v89 = vunpack.c.l.b16 %v51
    %v90 = vunpack.c.l.b16 %v52
    %v91 = vunpack.c.l.b16 %v53
    %v92 = vunpack.c.l.b16 %v54
    %v93 = vunpack.c.l.b16 %v55
    %v94 = vunpack.c.l.b16 %v56
    %v95 = vunpack.c.l.b16 %v57
    %v96 = vunpack.c.l.b16 %v58
    %v97 = vpack.c.b16 %v82, %v81
    %v98 = vpack.c.b16 %v84, %v83
    %v99 = vpack.c.b16 %v86, %v85
    %v100 = vpack.c.b16 %v88, %v87
    %v101 = vpack.c.b16 %v90, %v89
    %v102 = vpack.c.b16 %v92, %v91
    %v103 = vpack.c.b16 %v94, %v93
    %v104 = vpack.c.b16 %v96, %v95
    %113 = vmatprep.subr.bf16.mxu0 0
    %114 = vmatpush1.bf16.msra.mxu0 %v104
    %115 = vmatprep.subr.bf16.mxu0 0
    %116 = vmatpush1.bf16.msra.mxu0 %v103
    %117 = vmatprep.subr.bf16.mxu0 0
    %118 = vmatpush1.bf16.msra.mxu0 %v102
    %119 = vmatprep.subr.bf16.mxu0 0
    %120 = vmatpush1.bf16.msra.mxu0 %v101
    %121 = vmatprep.subr.bf16.mxu0 0
    %122 = vmatpush1.bf16.msra.mxu0 %v100
    %123 = vmatprep.subr.bf16.mxu0 0
    %124 = vmatpush1.bf16.msra.mxu0 %v99
    %125 = vmatprep.subr.bf16.mxu0 0
    %126 = vmatpush1.bf16.msra.mxu0 %v98
    %127 = vmatprep.subr.bf16.mxu0 0
    %128 = vmatpush1.bf16.msra.mxu0 %v97
    %129 = vmatprep.subr.bf16.mxu0 0
    %130 = vmatpush2.bf16.msra.mxu0 0
    %131 = vmatprep.subr.bf16.mxu0 0
    %132 = vmatpush2.bf16.msra.mxu0 0
    %133 = vmatprep.subr.bf16.mxu0 0
    %134 = vmatpush2.bf16.msra.mxu0 0
    %135 = vmatprep.subr.bf16.mxu0 0
    %136 = vmatpush2.bf16.msra.mxu0 0
    %137 = vmatprep.subr.bf16.mxu0 0
    %138 = vmatpush2.bf16.msra.mxu0 0
    %139 = vmatprep.subr.bf16.mxu0 0
    %140 = vmatpush2.bf16.msra.mxu0 0
    %141 = vmatprep.subr.bf16.mxu0 0
    %142 = vmatpush2.bf16.msra.mxu0 0
    %143 = vmatprep.subr.bf16.mxu0 0
    %144 = vmatpush2.bf16.msra.mxu0 0
    %145 = vmatprep.mubr.bf16.mxu0 0
    %146 = vmatmul.mubr.bf16.gmra.mxu0 %v63
    %v147 = vpop.f32.mrf.mxu0
    %v148 = vadd.f32 0.0, %v147
    %v149 = vpop.f32.mrf.mxu0
    %v150 = vpop.f32.mrf.mxu0
    %v151 = vadd.f32 0.0, %v150
    %v152 = vpop.f32.mrf.mxu0
    %153 = vdwg.mxu0
    %p154 = scmp.eq.s32.totalorder 0, 0
    // Predicated region
    $region18: #{tpu_custom_call.1} parent=1 // pred_check
      %p155 = pneg %p154
    $region19: #{tpu_custom_call.1} parent=1 // pred_check_branch
      %157 = sbr.rel (%p155) target = $region21
    $region20: #{tpu_custom_call.1} parent=1 // pred_region
      %158 = vst [vmem:[#allocation2] sm:$0xff] %v148
      %159 = vst [vmem:[#allocation2 + $0x8] sm:$0xff] %v151
    $region21: #{tpu_custom_call.1} parent=1 // pred_fallthru
      _
    %p160 = scmp.ne.s32.totalorder 0, 0
    // Predicated region
    $region22: #{tpu_custom_call.1} parent=1 // pred_check
      %p161 = pneg %p160
    $region23: #{tpu_custom_call.1} parent=1 // pred_check_branch
      %163 = sbr.rel (%p161) target = $region25
    $region24: #{tpu_custom_call.1} parent=1 // pred_region
      %v164 = vld [vmem:[#allocation2] sm:$0xff]
      %v165 = vld [vmem:[#allocation2 + $0x8] sm:$0xff]
      %v166 = vadd.f32 %v164, %v148
      %v167 = vadd.f32 %v165, %v151
      %168 = vst [vmem:[#allocation2] sm:$0xff] %v166
      %169 = vst [vmem:[#allocation2 + $0x8] sm:$0xff] %v167
    $region25: #{tpu_custom_call.1} parent=1 // pred_fallthru
      _
    // Predicated region
    $region26: #{tpu_custom_call.1} parent=1 // pred_check
      %p170 = pneg %p154
    $region27: #{tpu_custom_call.1} parent=1 // pred_check_branch
      %172 = sbr.rel (%p170) target = $region29
    $region28: #{tpu_custom_call.1} parent=1 // pred_region
      %v173 = vld [vmem:[#allocation2] sm:$0xff]
      %v174 = vld [vmem:[#allocation2 + $0x8] sm:$0xff]
      %175 = vst [vmem:[#allocation8] sm:$0xff] %v173
      %176 = vst [vmem:[#allocation8 + $0x8] sm:$0xff] %v174
    $region29: #{tpu_custom_call.1} parent=1 // pred_fallthru
      _
    // Predicated region
    $region30: #{tpu_custom_call.1} parent=1 // pred_check
      _
    $region31: #{tpu_custom_call.1} parent=1 // pred_check_branch
      %178 = sbr.rel (0) target = $region33
    $region32: #{tpu_custom_call.1} parent=1 // pred_region
      %s180 = ssub.s32 256, 256
      %181 = vsyncadd [#allocation5], %s180
      %s182 = sshll.u32 [#allocation8], 4
      %s183 = int_to_ptr.vmem [resolvable:$true] %s182
      %188 = dma.vmem_to_hbm [thread:$0]  %s183, 256, %s2, [#allocation5], 128, 128, 8
    $region33: #{tpu_custom_call.1} parent=1 // pred_fallthru
      _
    // Predicated region
    $region34: #{tpu_custom_call.1} parent=1 // pred_check
      _
    $region35: #{tpu_custom_call.1} parent=1 // pred_check_branch
      %190 = sbr.rel (0) target = $region37
    $region36: #{tpu_custom_call.1} parent=1 // pred_region
      %191 = dma.done [#allocation5], 256
    $region37: #{tpu_custom_call.1} parent=1 // pred_fallthru
      _
    %192 = vsyncpa [#allocation4], 1
    %193 = vsyncpa [#allocation7], 1
    %194 = vsyncpa [#allocation5], 1

</llo_original>
